<compile_context>
chip_gen: v7x
topology: tpu7x:2x2x1
jax: 0.10.0
libtpu: 0.0.40
codegen_flags: <defaults>
</compile_context>

<pallas_src>
import functools

import jax
import jax.numpy as jnp
import numpy as np
from jax import lax
from jax.experimental import pallas as pl
from jax.experimental.pallas import tpu as pltpu


def _round_up(x, m):
    return ((x + m - 1) // m) * m


def cae_kernel(p_ref, w1_ref, b1_ref, wd_ref, bd_ref, out_ref, *, rs):
    # p_ref : (1, 2, 2, Cin_p, L_in)  bf16  parity planes, flattened (nb,u,v) lanes
    # w1_ref: (Ch, 9*Cin_p)           bf16  im2col conv weight, K order (di, dj, ci)
    # b1_ref: (Ch, 1)                 f32
    # wd_ref: (4*Cin, Ch)             f32   fused ConvTranspose weight, rows (a, b, cout)
    # bd_ref: (4*Cin, 1)              f32
    # out_ref:(1, 4*Cin, L_out)       bf16  lane-dense decoded output
    # rs    : Wp + 1, row stride of a flattened parity plane (static).
    _, _, l = out_ref.shape

    w1 = w1_ref[...]
    b1 = b1_ref[...]
    wd = wd_ref[...]
    bd = bd_ref[...]

    # Deduplicated, bf16-native shifted slabs: 16 distinct (rp, cp, shift).
    base = {}
    for rp in range(2):
        for cp in range(2):
            for s in (0, 1, rs, rs + 1):
                base[(rp, cp, s)] = p_ref[0, rp, cp, :, s:s + l]     # (Cin_p, L) bf16

    # One fused im2col slab covering all 4 pooling parities (lane-concat of
    # 128-multiple segments; sublane concat of the 9 taps goes to the XLU).
    parities = ((0, 0), (0, 1), (1, 0), (1, 1))
    rows = []
    for di in range(3):
        for dj in range(3):
            segs = []
            for (a, b) in parities:
                rp, r0 = (a + di) % 2, (a + di) // 2
                cp, c0 = (b + dj) % 2, (b + dj) // 2
                segs.append(base[(rp, cp, r0 * rs + c0)])
            rows.append(jnp.concatenate(segs, axis=1))               # (Cin_p, 4L)
    x_all = jnp.concatenate(rows, axis=0)                            # (9*Cin_p, 4L) bf16

    # Encoder conv fused with the 2x2/stride-2 max-pool: a single wide matmul,
    # then a max over the four 128-aligned parity segments.
    acc = jnp.dot(w1, x_all, preferred_element_type=jnp.float32)     # (Ch, 4L) f32
    pooled = jnp.maximum(jnp.maximum(acc[:, 0 * l:1 * l], acc[:, 1 * l:2 * l]),
                         jnp.maximum(acc[:, 2 * l:3 * l], acc[:, 3 * l:4 * l]))

    # Bias + LeakyReLU once, after the max (bias parity-invariant, LeakyReLU monotone).
    feat = pooled + b1
    feat = jnp.where(feat > 0, feat, 0.01 * feat)                    # LeakyReLU(0.01)

    # Decoder ConvTranspose2d(k=2, s=2): all 4 sub-pixels in one f32 matmul
    # (K = Ch = 8 -> negligible cost; avoids double bf16 rounding).
    y = jnp.dot(wd, feat, preferred_element_type=jnp.float32) + bd   # (4*Cin, L) f32
    out_ref[0] = jax.nn.sigmoid(y).astype(out_ref.dtype)


@jax.jit
def cae_forward_pallas(x, params):
    w1, b1, wd, bd = params["w1"], params["b1"], params["wd"], params["bd"]
    N, Cin, H, W = x.shape
    Ch = w1.shape[0]
    assert H % 2 == 0 and W % 2 == 0, "MaxPool2d(2,2) path assumes even H, W"
    Hp, Wp = H // 2, W // 2
    rs = Wp + 1                              # flattened parity-plane row stride
    Lfull = (Hp + 1) * rs                    # flattened (u, v) plane length / batch elem
    Cin_p = _round_up(Cin, 8)                # keep K = 9*Cin_p small (72 for Cin<=8)

    # Trim invariant: taps of kept outputs (u<Hp, v<Wp) never read past their
    # own batch element's flattened plane: max read = (Hp-1)*rs+(Wp-1)+(rs+1) = Lfull-1.
    assert (Hp - 1) * rs + (Wp - 1) + (rs + 1) < Lfull

    # Block sizing: wide lane blocks amortize the ~0.35us/step overhead and the
    # tiny-M MXU fill/drain; per-lane VMEM working set ~1 KB so 4096 lanes is
    # only a few MiB.  Keep Nblk >= 2 whenever N >= 2 so both v7x TCs get work.
    # TODO(synk): spatial tiling for the Lfull >> 4096 (very large image) case.
    LANE_TARGET = 4096
    Nb = max(1, min(N, LANE_TARGET // Lfull))
    if N >= 2:
        Nb = min(Nb, (N + 1) // 2)           # ensure >= 2 grid blocks (megacore)
    Nblk = pl.cdiv(N, Nb)
    Npad = Nblk * Nb
    L_out = _round_up(Nb * Lfull, 128)       # lane-dense (multiple of 128) output width
    L_in = _round_up(L_out + (Wp + 2), 128)  # headroom for the largest tap shift, vreg-aligned

    # ---- input prep (bf16 from the start -> half the re-layout HBM traffic) ----
    # TODO(synk): fold this NCHW -> parity-plane re-layout into the producer of x
    # (or strided in-kernel DMA with memory_space=pl.ANY) to remove the extra
    # HBM round trip when embedded in a larger model.
    xb = x.astype(jnp.bfloat16)
    xp = jnp.pad(xb, ((0, Npad - N), (0, Cin_p - Cin), (1, 1), (1, 1)))
    xp = xp.reshape(Npad, Cin_p, Hp + 1, 2, Wp + 1, 2)        # (n, c, u, rp, v, cp)
    xp = xp.transpose(0, 3, 5, 1, 2, 4)                       # (n, rp, cp, c, u, v)
    xp = xp.reshape(Nblk, Nb, 2, 2, Cin_p, Hp + 1, Wp + 1)
    xp = xp.transpose(0, 2, 3, 4, 1, 5, 6)                    # (blk, rp, cp, c, nb, u, v)
    pin = xp.reshape(Nblk, 2, 2, Cin_p, Nb * Lfull)
    pin = jnp.pad(pin, ((0, 0),) * 4 + ((0, L_in - Nb * Lfull),))

    # ---- parameter prep ----
    w1p = jnp.pad(w1, ((0, 0), (0, Cin_p - Cin), (0, 0), (0, 0)))     # (Ch, Cin_p, 3, 3)
    w1r = w1p.transpose(0, 2, 3, 1).reshape(Ch, 9 * Cin_p).astype(jnp.bfloat16)
    b1r = b1.reshape(Ch, 1).astype(jnp.float32)
    wdr = wd.transpose(2, 3, 1, 0).reshape(4 * Cin, Ch).astype(jnp.float32)
    bdr = jnp.tile(bd, 4).reshape(4 * Cin, 1).astype(jnp.float32)

    out_raw = pl.pallas_call(
        functools.partial(cae_kernel, rs=rs),
        out_shape=jax.ShapeDtypeStruct((Nblk, 4 * Cin, L_out), jnp.bfloat16),
        grid=(Nblk,),
        in_specs=[
            pl.BlockSpec((1, 2, 2, Cin_p, L_in), lambda g: (g, 0, 0, 0, 0)),
            pl.BlockSpec((Ch, 9 * Cin_p), lambda g: (0, 0)),
            pl.BlockSpec((Ch, 1), lambda g: (0, 0)),
            pl.BlockSpec((4 * Cin, Ch), lambda g: (0, 0)),
            pl.BlockSpec((4 * Cin, 1), lambda g: (0, 0)),
        ],
        out_specs=pl.BlockSpec((1, 4 * Cin, L_out), lambda g: (g, 0, 0)),
        compiler_params=pltpu.CompilerParams(
            dimension_semantics=("parallel",),
            vmem_limit_bytes=32 * 1024 * 1024),
    )(pin, w1r, b1r, wdr, bdr)

    # ---- output post-processing: drop phantom lanes, interleave sub-pixels ----
    core = out_raw[:, :, :Nb * Lfull]
    core = core.reshape(Nblk, 2, 2, Cin, Nb, Hp + 1, Wp + 1)[..., :Hp, :Wp]
    core = core.transpose(0, 4, 3, 5, 1, 6, 2).reshape(Npad, Cin, H, W)[:N]

    # output_padding=1: the extra last row/column gets only sigmoid(decoder bias).
    # One pre-filled buffer + a single scatter (no double concatenate).
    edge = jax.nn.sigmoid(bd.astype(jnp.float32))                     # (Cin,)
    out = jnp.broadcast_to(edge[None, :, None, None], (N, Cin, H + 1, W + 1))
    out = out.at[:, :, :H, :W].set(core.astype(jnp.float32))
    return out                                    # NCHW, (N, Cin, H+1, W+1) f32


def cae_forward_reference(x, params):
    """Pure-JAX (f32) reference mirroring the PyTorch forward semantics."""
    w1, b1, wd, bd = params["w1"], params["b1"], params["wd"], params["bd"]
    f = lax.conv_general_dilated(x, w1, window_strides=(1, 1),
                                 padding=((1, 1), (1, 1)),
                                 dimension_numbers=("NCHW", "OIHW", "NCHW"))
    f = f + b1[None, :, None, None]
    f = jnp.where(f > 0, f, 0.01 * f)                            # LeakyReLU(0.01)
    N, Ch, H, W = f.shape
    Hp, Wp = H // 2, W // 2
    p = f.reshape(N, Ch, Hp, 2, Wp, 2).max(axis=(3, 5))          # MaxPool2d(2,2)
    Cin = wd.shape[1]
    t = jnp.einsum("nchw,coab->nohawb", p, wd)                   # ConvTranspose2d k=2 s=2
    y = jnp.zeros((N, Cin, 2 * Hp + 1, 2 * Wp + 1), jnp.float32)
    y = y + bd[None, :, None, None]
    y = y.at[:, :, :2 * Hp, :2 * Wp].add(t.reshape(N, Cin, 2 * Hp, 2 * Wp))
    return jax.nn.sigmoid(y)


if __name__ == "__main__":
    key = jax.random.PRNGKey(0)
    N, Cin, Ch, H, W = 2, 4, 8, 16, 16
    k0, k1, k2, k3, k4 = jax.random.split(key, 5)
    x = jax.random.normal(k0, (N, Cin, H, W), jnp.float32)
    params = {
        "w1": jax.random.normal(k1, (Ch, Cin, 3, 3), jnp.float32) * 0.15,  # Conv2d weight
        "b1": jax.random.normal(k2, (Ch,), jnp.float32) * 0.05,            # Conv2d bias
        "wd": jax.random.normal(k3, (Ch, Cin, 2, 2), jnp.float32) * 0.15,  # ConvT weight
        "bd": jax.random.normal(k4, (Cin,), jnp.float32) * 0.05,           # ConvT bias
    }

    out = jax.block_until_ready(cae_forward_pallas(x, params))
    ref = jax.block_until_ready(cae_forward_reference(x, params))

    assert out.shape == (N, Cin, H + 1, W + 1), out.shape
    # bf16 MXU operands / bf16 kernel output -> relaxed tolerance.
    if not np.allclose(np.asarray(out), np.asarray(ref), atol=1e-2, rtol=1e-2):
        raise AssertionError("Pallas CAE output mismatch vs reference")
    print("KERNEL_OK")
</pallas_src>

<mosaic_0001>
module attributes {stable_mosaic.version = 11 : i64} {
  func.func @cae_kernel(%arg0: i32, %arg1: memref<1x2x2x8x256xbf16, #tpu.memory_space<vmem>>, %arg2: memref<8x72xbf16, #tpu.memory_space<vmem>>, %arg3: memref<8x1xf32, #tpu.memory_space<vmem>>, %arg4: memref<16x8xf32, #tpu.memory_space<vmem>>, %arg5: memref<16x1xf32, #tpu.memory_space<vmem>>, %arg6: memref<1x16x128xbf16, #tpu.memory_space<vmem>>) attributes {dimension_semantics = [#tpu.dimension_semantics<parallel>], iteration_bounds = array<i64: 2>, scalar_prefetch = 0 : i64, scratch_operands = 0 : i64, tpu.core_type = #tpu.core_type<tc>, window_params = [{transform_indices = @transform_0, window_bounds = array<i64: 1, 2, 2, 8, 256>}, {pipeline_mode = #tpu.pipeline_mode<synchronous>, transform_indices = @transform_1, window_bounds = array<i64: 8, 72>}, {pipeline_mode = #tpu.pipeline_mode<synchronous>, transform_indices = @transform_2, window_bounds = array<i64: 8, 1>}, {pipeline_mode = #tpu.pipeline_mode<synchronous>, transform_indices = @transform_3, window_bounds = array<i64: 16, 8>}, {pipeline_mode = #tpu.pipeline_mode<synchronous>, transform_indices = @transform_4, window_bounds = array<i64: 16, 1>}, {transform_indices = @transform_5, window_bounds = array<i64: 1, 16, 128>}]} {
    %c0 = arith.constant 0 : index
    %c0_0 = arith.constant 0 : index
    %0 = vector.load %arg2[%c0, %c0_0] : memref<8x72xbf16, #tpu.memory_space<vmem>>, vector<8x72xbf16>
    %c0_1 = arith.constant 0 : index
    %c0_2 = arith.constant 0 : index
    %1 = vector.load %arg3[%c0_1, %c0_2] : memref<8x1xf32, #tpu.memory_space<vmem>>, vector<8x1xf32>
    %c0_3 = arith.constant 0 : index
    %c0_4 = arith.constant 0 : index
    %2 = vector.load %arg4[%c0_3, %c0_4] : memref<16x8xf32, #tpu.memory_space<vmem>>, vector<16x8xf32>
    %c0_5 = arith.constant 0 : index
    %c0_6 = arith.constant 0 : index
    %3 = vector.load %arg5[%c0_5, %c0_6] : memref<16x1xf32, #tpu.memory_space<vmem>>, vector<16x1xf32>
    %c0_7 = arith.constant 0 : index
    %c0_8 = arith.constant 0 : index
    %c0_9 = arith.constant 0 : index
    %c0_10 = arith.constant 0 : index
    %c0_11 = arith.constant 0 : index
    %4 = vector.load %arg1[%c0_7, %c0_8, %c0_9, %c0_10, %c0_11] : memref<1x2x2x8x256xbf16, #tpu.memory_space<vmem>>, vector<1x1x1x8x128xbf16>
    %5 = vector.shape_cast %4 : vector<1x1x1x8x128xbf16> to vector<8x128xbf16>
    %c0_12 = arith.constant 0 : index
    %c0_13 = arith.constant 0 : index
    %c0_14 = arith.constant 0 : index
    %c0_15 = arith.constant 0 : index
    %c1 = arith.constant 1 : index
    %6 = vector.load %arg1[%c0_12, %c0_13, %c0_14, %c0_15, %c1] : memref<1x2x2x8x256xbf16, #tpu.memory_space<vmem>>, vector<1x1x1x8x128xbf16>
    %7 = vector.shape_cast %6 : vector<1x1x1x8x128xbf16> to vector<8x128xbf16>
    %c0_16 = arith.constant 0 : index
    %c0_17 = arith.constant 0 : index
    %c0_18 = arith.constant 0 : index
    %c0_19 = arith.constant 0 : index
    %c9 = arith.constant 9 : index
    %8 = vector.load %arg1[%c0_16, %c0_17, %c0_18, %c0_19, %c9] : memref<1x2x2x8x256xbf16, #tpu.memory_space<vmem>>, vector<1x1x1x8x128xbf16>
    %9 = vector.shape_cast %8 : vector<1x1x1x8x128xbf16> to vector<8x128xbf16>
    %c0_20 = arith.constant 0 : index
    %c0_21 = arith.constant 0 : index
    %c0_22 = arith.constant 0 : index
    %c0_23 = arith.constant 0 : index
    %c10 = arith.constant 10 : index
    %10 = vector.load %arg1[%c0_20, %c0_21, %c0_22, %c0_23, %c10] : memref<1x2x2x8x256xbf16, #tpu.memory_space<vmem>>, vector<1x1x1x8x128xbf16>
    %11 = vector.shape_cast %10 : vector<1x1x1x8x128xbf16> to vector<8x128xbf16>
    %c0_24 = arith.constant 0 : index
    %c0_25 = arith.constant 0 : index
    %c1_26 = arith.constant 1 : index
    %c0_27 = arith.constant 0 : index
    %c0_28 = arith.constant 0 : index
    %12 = vector.load %arg1[%c0_24, %c0_25, %c1_26, %c0_27, %c0_28] : memref<1x2x2x8x256xbf16, #tpu.memory_space<vmem>>, vector<1x1x1x8x128xbf16>
    %13 = vector.shape_cast %12 : vector<1x1x1x8x128xbf16> to vector<8x128xbf16>
    %c0_29 = arith.constant 0 : index
    %c0_30 = arith.constant 0 : index
    %c1_31 = arith.constant 1 : index
    %c0_32 = arith.constant 0 : index
    %c1_33 = arith.constant 1 : index
    %14 = vector.load %arg1[%c0_29, %c0_30, %c1_31, %c0_32, %c1_33] : memref<1x2x2x8x256xbf16, #tpu.memory_space<vmem>>, vector<1x1x1x8x128xbf16>
    %15 = vector.shape_cast %14 : vector<1x1x1x8x128xbf16> to vector<8x128xbf16>
    %c0_34 = arith.constant 0 : index
    %c0_35 = arith.constant 0 : index
    %c1_36 = arith.constant 1 : index
    %c0_37 = arith.constant 0 : index
    %c9_38 = arith.constant 9 : index
    %16 = vector.load %arg1[%c0_34, %c0_35, %c1_36, %c0_37, %c9_38] : memref<1x2x2x8x256xbf16, #tpu.memory_space<vmem>>, vector<1x1x1x8x128xbf16>
    %17 = vector.shape_cast %16 : vector<1x1x1x8x128xbf16> to vector<8x128xbf16>
    %c0_39 = arith.constant 0 : index
    %c0_40 = arith.constant 0 : index
    %c1_41 = arith.constant 1 : index
    %c0_42 = arith.constant 0 : index
    %c10_43 = arith.constant 10 : index
    %18 = vector.load %arg1[%c0_39, %c0_40, %c1_41, %c0_42, %c10_43] : memref<1x2x2x8x256xbf16, #tpu.memory_space<vmem>>, vector<1x1x1x8x128xbf16>
    %19 = vector.shape_cast %18 : vector<1x1x1x8x128xbf16> to vector<8x128xbf16>
    %c0_44 = arith.constant 0 : index
    %c1_45 = arith.constant 1 : index
    %c0_46 = arith.constant 0 : index
    %c0_47 = arith.constant 0 : index
    %c0_48 = arith.constant 0 : index
    %20 = vector.load %arg1[%c0_44, %c1_45, %c0_46, %c0_47, %c0_48] : memref<1x2x2x8x256xbf16, #tpu.memory_space<vmem>>, vector<1x1x1x8x128xbf16>
    %21 = vector.shape_cast %20 : vector<1x1x1x8x128xbf16> to vector<8x128xbf16>
    %c0_49 = arith.constant 0 : index
    %c1_50 = arith.constant 1 : index
    %c0_51 = arith.constant 0 : index
    %c0_52 = arith.constant 0 : index
    %c1_53 = arith.constant 1 : index
    %22 = vector.load %arg1[%c0_49, %c1_50, %c0_51, %c0_52, %c1_53] : memref<1x2x2x8x256xbf16, #tpu.memory_space<vmem>>, vector<1x1x1x8x128xbf16>
    %23 = vector.shape_cast %22 : vector<1x1x1x8x128xbf16> to vector<8x128xbf16>
    %c0_54 = arith.constant 0 : index
    %c1_55 = arith.constant 1 : index
    %c0_56 = arith.constant 0 : index
    %c0_57 = arith.constant 0 : index
    %c9_58 = arith.constant 9 : index
    %24 = vector.load %arg1[%c0_54, %c1_55, %c0_56, %c0_57, %c9_58] : memref<1x2x2x8x256xbf16, #tpu.memory_space<vmem>>, vector<1x1x1x8x128xbf16>
    %25 = vector.shape_cast %24 : vector<1x1x1x8x128xbf16> to vector<8x128xbf16>
    %c0_59 = arith.constant 0 : index
    %c1_60 = arith.constant 1 : index
    %c0_61 = arith.constant 0 : index
    %c0_62 = arith.constant 0 : index
    %c10_63 = arith.constant 10 : index
    %26 = vector.load %arg1[%c0_59, %c1_60, %c0_61, %c0_62, %c10_63] : memref<1x2x2x8x256xbf16, #tpu.memory_space<vmem>>, vector<1x1x1x8x128xbf16>
    %27 = vector.shape_cast %26 : vector<1x1x1x8x128xbf16> to vector<8x128xbf16>
    %c0_64 = arith.constant 0 : index
    %c1_65 = arith.constant 1 : index
    %c1_66 = arith.constant 1 : index
    %c0_67 = arith.constant 0 : index
    %c0_68 = arith.constant 0 : index
    %28 = vector.load %arg1[%c0_64, %c1_65, %c1_66, %c0_67, %c0_68] : memref<1x2x2x8x256xbf16, #tpu.memory_space<vmem>>, vector<1x1x1x8x128xbf16>
    %29 = vector.shape_cast %28 : vector<1x1x1x8x128xbf16> to vector<8x128xbf16>
    %c0_69 = arith.constant 0 : index
    %c1_70 = arith.constant 1 : index
    %c1_71 = arith.constant 1 : index
    %c0_72 = arith.constant 0 : index
    %c1_73 = arith.constant 1 : index
    %30 = vector.load %arg1[%c0_69, %c1_70, %c1_71, %c0_72, %c1_73] : memref<1x2x2x8x256xbf16, #tpu.memory_space<vmem>>, vector<1x1x1x8x128xbf16>
    %31 = vector.shape_cast %30 : vector<1x1x1x8x128xbf16> to vector<8x128xbf16>
    %c0_74 = arith.constant 0 : index
    %c1_75 = arith.constant 1 : index
    %c1_76 = arith.constant 1 : index
    %c0_77 = arith.constant 0 : index
    %c9_78 = arith.constant 9 : index
    %32 = vector.load %arg1[%c0_74, %c1_75, %c1_76, %c0_77, %c9_78] : memref<1x2x2x8x256xbf16, #tpu.memory_space<vmem>>, vector<1x1x1x8x128xbf16>
    %33 = vector.shape_cast %32 : vector<1x1x1x8x128xbf16> to vector<8x128xbf16>
    %c0_79 = arith.constant 0 : index
    %c1_80 = arith.constant 1 : index
    %c1_81 = arith.constant 1 : index
    %c0_82 = arith.constant 0 : index
    %c10_83 = arith.constant 10 : index
    %34 = vector.load %arg1[%c0_79, %c1_80, %c1_81, %c0_82, %c10_83] : memref<1x2x2x8x256xbf16, #tpu.memory_space<vmem>>, vector<1x1x1x8x128xbf16>
    %35 = vector.shape_cast %34 : vector<1x1x1x8x128xbf16> to vector<8x128xbf16>
    %36 = tpu.concatenate %5, %13, %21, %29 in 1 : vector<8x128xbf16>, vector<8x128xbf16>, vector<8x128xbf16>, vector<8x128xbf16> -> vector<8x512xbf16>
    %37 = tpu.concatenate %13, %7, %29, %23 in 1 : vector<8x128xbf16>, vector<8x128xbf16>, vector<8x128xbf16>, vector<8x128xbf16> -> vector<8x512xbf16>
    %38 = tpu.concatenate %7, %15, %23, %31 in 1 : vector<8x128xbf16>, vector<8x128xbf16>, vector<8x128xbf16>, vector<8x128xbf16> -> vector<8x512xbf16>
    %39 = tpu.concatenate %21, %29, %9, %17 in 1 : vector<8x128xbf16>, vector<8x128xbf16>, vector<8x128xbf16>, vector<8x128xbf16> -> vector<8x512xbf16>
    %40 = tpu.concatenate %29, %23, %17, %11 in 1 : vector<8x128xbf16>, vector<8x128xbf16>, vector<8x128xbf16>, vector<8x128xbf16> -> vector<8x512xbf16>
    %41 = tpu.concatenate %23, %31, %11, %19 in 1 : vector<8x128xbf16>, vector<8x128xbf16>, vector<8x128xbf16>, vector<8x128xbf16> -> vector<8x512xbf16>
    %42 = tpu.concatenate %9, %17, %25, %33 in 1 : vector<8x128xbf16>, vector<8x128xbf16>, vector<8x128xbf16>, vector<8x128xbf16> -> vector<8x512xbf16>
    %43 = tpu.concatenate %17, %11, %33, %27 in 1 : vector<8x128xbf16>, vector<8x128xbf16>, vector<8x128xbf16>, vector<8x128xbf16> -> vector<8x512xbf16>
    %44 = tpu.concatenate %11, %19, %27, %35 in 1 : vector<8x128xbf16>, vector<8x128xbf16>, vector<8x128xbf16>, vector<8x128xbf16> -> vector<8x512xbf16>
    %45 = tpu.concatenate %36, %37, %38, %39, %40, %41, %42, %43, %44 in 0 : vector<8x512xbf16>, vector<8x512xbf16>, vector<8x512xbf16>, vector<8x512xbf16>, vector<8x512xbf16>, vector<8x512xbf16>, vector<8x512xbf16>, vector<8x512xbf16>, vector<8x512xbf16> -> vector<72x512xbf16>
    %cst = arith.constant dense<0.000000e+00> : vector<8x512xf32>
    %46 = tpu.matmul %0, %45, %cst {dimension_numbers = #tpu.dot_dimension_numbers<[1], [0], [0], [1], [0, 0, 1, 1], [], []>} : vector<8x72xbf16>, vector<72x512xbf16>, vector<8x512xf32> -> vector<8x512xf32>
    %47 = vector.extract_strided_slice %46 {offsets = [0, 0], sizes = [8, 128], strides = [1, 1]} : vector<8x512xf32> to vector<8x128xf32>
    %48 = vector.extract_strided_slice %46 {offsets = [0, 128], sizes = [8, 128], strides = [1, 1]} : vector<8x512xf32> to vector<8x128xf32>
    %49 = arith.maximumf %47, %48 : vector<8x128xf32>
    %50 = vector.extract_strided_slice %46 {offsets = [0, 256], sizes = [8, 128], strides = [1, 1]} : vector<8x512xf32> to vector<8x128xf32>
    %51 = vector.extract_strided_slice %46 {offsets = [0, 384], sizes = [8, 128], strides = [1, 1]} : vector<8x512xf32> to vector<8x128xf32>
    %52 = arith.maximumf %50, %51 : vector<8x128xf32>
    %53 = arith.maximumf %49, %52 : vector<8x128xf32>
    %54 = vector.broadcast %1 : vector<8x1xf32> to vector<8x128xf32>
    %55 = arith.addf %53, %54 : vector<8x128xf32>
    %cst_84 = arith.constant 0.000000e+00 : f32
    %56 = vector.broadcast %cst_84 : f32 to vector<8x128xf32>
    %57 = arith.cmpf ogt, %55, %56 : vector<8x128xf32>
    %cst_85 = arith.constant 0.00999999977 : f32
    %58 = vector.broadcast %cst_85 : f32 to vector<8x128xf32>
    %59 = arith.mulf %58, %55 : vector<8x128xf32>
    %60 = arith.select %57, %55, %59 : vector<8x128xi1>, vector<8x128xf32>
    %cst_86 = arith.constant dense<0.000000e+00> : vector<16x128xf32>
    %61 = tpu.matmul %2, %60, %cst_86 {dimension_numbers = #tpu.dot_dimension_numbers<[1], [0], [0], [1], [0, 0, 1, 1], [], []>} : vector<16x8xf32>, vector<8x128xf32>, vector<16x128xf32> -> vector<16x128xf32>
    %62 = vector.broadcast %3 : vector<16x1xf32> to vector<16x128xf32>
    %63 = arith.addf %61, %62 : vector<16x128xf32>
    %64 = arith.negf %63 : vector<16x128xf32>
    %65 = math.exp %64 : vector<16x128xf32>
    %cst_87 = arith.constant 1.000000e+00 : f32
    %66 = vector.broadcast %cst_87 : f32 to vector<16x128xf32>
    %67 = arith.addf %66, %65 : vector<16x128xf32>
    %68 = arith.divf %66, %67 : vector<16x128xf32>
    %69 = arith.truncf %68 : vector<16x128xf32> to vector<16x128xbf16>
    %c0_88 = arith.constant 0 : index
    %c0_89 = arith.constant 0 : index
    %c0_90 = arith.constant 0 : index
    %70 = vector.load %arg6[%c0_88, %c0_89, %c0_90] : memref<1x16x128xbf16, #tpu.memory_space<vmem>>, vector<1x16x128xbf16>
    %71 = vector.shape_cast %70 : vector<1x16x128xbf16> to vector<16x128xbf16>
    %72 = vector.shape_cast %69 : vector<16x128xbf16> to vector<1x16x128xbf16>
    tpu.vector_store %arg6[%c0_88, %c0_89, %c0_90], %72 {strides = array<i32>} : memref<1x16x128xbf16, #tpu.memory_space<vmem>>, vector<1x16x128xbf16>,
    return
  }
  func.func @transform_0(%arg0: i32) -> (i32, i32, i32, i32, i32) {
    %c0_i32 = arith.constant 0 : i32
    %c0_i32_0 = arith.constant 0 : i32
    %c0_i32_1 = arith.constant 0 : i32
    %c0_i32_2 = arith.constant 0 : i32
    %c0_i32_3 = arith.constant 0 : i32
    return %arg0, %c0_i32, %c0_i32_0, %c0_i32_1, %c0_i32_2 : i32, i32, i32, i32, i32
  }
  func.func @transform_1(%arg0: i32) -> (i32, i32) {
    %c0_i32 = arith.constant 0 : i32
    %c0_i32_0 = arith.constant 0 : i32
    %c0_i32_1 = arith.constant 0 : i32
    return %c0_i32, %c0_i32_0 : i32, i32
  }
  func.func @transform_2(%arg0: i32) -> (i32, i32) {
    %c0_i32 = arith.constant 0 : i32
    %c0_i32_0 = arith.constant 0 : i32
    %c0_i32_1 = arith.constant 0 : i32
    return %c0_i32, %c0_i32_0 : i32, i32
  }
  func.func @transform_3(%arg0: i32) -> (i32, i32) {
    %c0_i32 = arith.constant 0 : i32
    %c0_i32_0 = arith.constant 0 : i32
    %c0_i32_1 = arith.constant 0 : i32
    return %c0_i32, %c0_i32_0 : i32, i32
  }
  func.func @transform_4(%arg0: i32) -> (i32, i32) {
    %c0_i32 = arith.constant 0 : i32
    %c0_i32_0 = arith.constant 0 : i32
    %c0_i32_1 = arith.constant 0 : i32
    return %c0_i32, %c0_i32_0 : i32, i32
  }
  func.func @transform_5(%arg0: i32) -> (i32, i32, i32) {
    %c0_i32 = arith.constant 0 : i32
    %c0_i32_0 = arith.constant 0 : i32
    %c0_i32_1 = arith.constant 0 : i32
    return %arg0, %c0_i32, %c0_i32_0 : i32, i32, i32
  }
}

</mosaic_0001>

<llo_original>
// kernel: tile.8
$region0: #{tile.8}
  #allocation0 [shape = 's32[1]{0}', space=sflag, size = 0x4, scoped, tag = 'scoped memory for tile.8']
  %s0 = inlined_call_operand.vmem [shape: f32[4], index: 0, kind: input, shape index: {}]
  %s1 = inlined_call_operand.vmem [shape: f32[4,4], index: 1, kind: output, shape index: {}]
  // Predicated region
  $region2: #{tile.8} parent=0 // pred_check
    _
  $region3: #{tile.8} parent=0 // pred_check_branch
    %3 = sbr.rel (0) target = $region5
  $region4: #{tile.8} parent=0 // pred_region
    _
  $region5: #{tile.8} parent=0 // pred_fallthru
    _
  %v4 = vld [vmem:[%s0] ss:$0 sm:$0xff]
  %5 = vst [vmem:[%s1] sm:$0xf] %v4

// kernel: tile.0
$region0: #{tile.0}
  %s0 = inlined_call_operand.vmem [shape: f32[4,4], index: 0, kind: input, shape index: {}]
  %s1 = inlined_call_operand.vmem [shape: f32[16,1], index: 1, kind: output, shape index: {}]
  $region1: #{tile.0} parent=0
    #allocation0 [shape = 'u8[4096]{0}', space=vmem, size = 0x1000, scoped, tag = 'scoped mem for input reshape']
    %s3 = sshllo.u32 0, 4
    %v4 = vld [vmem:[%s0] sm:%s3]
    %5 = vst [vmem:[#allocation0] sm:%s3] %v4
    %v6 = vld [vmem:[#allocation0] sm:$0xf]
    %vm7 = vcmask 7168
    %8 = vst.msk [vmem:[%s1] ss:$4 sm:$0xf] %vm7, %v6
    %v9 = vld [vmem:[#allocation0] sm:$0xf]
    %10 = vrot.lane.b32.xlu0 %v9, 127
    %v11 = vpop.permute.xlu0 %10
    %vm12 = vcmask 7168
    %s13 = scalar_lea.vmem %s1, 1
    %14 = vst.msk [vmem:[%s13] ss:$4 sm:$0xf] %vm12, %v11
    %v15 = vld [vmem:[#allocation0] sm:$0xf]
    %16 = vrot.lane.b32.xlu0 %v15, 126
    %v17 = vpop.permute.xlu0 %16
    %vm18 = vcmask 7168
    %s19 = scalar_lea.vmem %s1, 2
    %20 = vst.msk [vmem:[%s19] ss:$4 sm:$0xf] %vm18, %v17
    %v21 = vld [vmem:[#allocation0] sm:$0xf]
    %22 = vrot.lane.b32.xlu0 %v21, 125
    %v23 = vpop.permute.xlu0 %22
    %vm24 = vcmask 7168
    %s25 = scalar_lea.vmem %s1, 3
    %26 = vst.msk [vmem:[%s25] ss:$4 sm:$0xf] %vm24, %v23

// kernel: cae_forward_pallas.1
$region0: #{cae_forward_pallas.1}
  #allocation0 [shape = 'u32[]', space=smem, size = 0x4, offset = 0x4, fixed_abs, tag = 'smem constant byte address 0x4 - core index']
  #allocation1 [shape = 'u32[144,128]{1,0:T(1,128)}', space=vmem, size = 0x12000, scoped, tag = 'internal scratch']
  %s0 = inlined_call_operand.vmem [shape: bf16[2,2,2,8,256], index: 0, kind: input, shape index: {}]
  %s1 = inlined_call_operand.vmem [shape: bf16[8,72], index: 1, kind: input, shape index: {}]
  %s2 = inlined_call_operand.vmem [shape: f32[8,1], index: 2, kind: input, shape index: {}]
  %s3 = inlined_call_operand.vmem [shape: f32[16,8], index: 3, kind: input, shape index: {}]
  %s4 = inlined_call_operand.vmem [shape: f32[16,1], index: 4, kind: input, shape index: {}]
  %s5 = inlined_call_operand.vmem [shape: bf16[2,16,128], index: 5, kind: output, shape index: {}]
  %s6 = sld [smem:[#allocation0]]
  $region53: #{cae_forward_pallas.1} parent=0
    _
  %s8 = ssub.s32 1, %s6
  %s9 = scalar_select 0, %s8, %s6
  loop: start=0, step=1, limit=4
  $region2: #{cae_forward_pallas.1} parent=0 // loop_pre_header
    _
  $region3: #{cae_forward_pallas.1} parent=0 // loop_header
    %s11 = sphi 0, %s15
    %p12 = scmp.ge.s32.totalorder %s11, 4
    %s21 = sphi 0, %s23
    %s24 = sphi 0, %s21
    %s25 = sphi 0, %s24
    %s41 = sphi 0, %s25
    %s45 = sphi 0, %s45
    %s47 = sphi 0, %s45
    %s48 = sphi 0, %s47
    %s62 = sphi 0, %s48
    %s66 = sphi 0, %s66
    %s68 = sphi 0, %s66
    %s69 = sphi 0, %s68
    %s83 = sphi 0, %s69
    %s87 = sphi 0, %s87
    %s89 = sphi 0, %s87
    %s90 = sphi 0, %s89
    %s104 = sphi 0, %s90
    %s108 = sphi 0, %s108
    %s110 = sphi 0, %s108
    %s111 = sphi 0, %s110
    %s125 = sphi 0, %s111
    %s131 = sphi 0, %s133
    %s134 = sphi 0, %s131
    %s135 = sphi 0, %s134
    %s151 = sphi 0, %s135
  $region4: #{cae_forward_pallas.1} parent=0 // loop_header_branch
    %14 = sbr.rel (%p12) target = $region8
  $region5: #{cae_forward_pallas.1} parent=0 // loop_body
    %s16 = ssub.s32 %s11, 1
    %s17 = ssub.s32 %s11, 2
    %s18 = sadd.s32 %s11, 1
    %s19 = ssub.s32 %s11, %s18
    %p20 = scmp.eq.s32.totalorder %s19, 0
    %s22 = sadd.s32 %s21, 1
    %s23 = scalar_select %p20, %s21, %s22
    %p26 = pneg %p20
    %p27 = scmp.eq.s32.totalorder %s11, 1
    %p28 = por %p26, %p27
    %p29 = scmp.ne.s32.totalorder %s21, %s24
    %p30 = scmp.eq.s32.totalorder %s11, 0
    %p31 = por %p29, %p30
    %p32 = scmp.ne.s32.totalorder %s21, %s24
    %p33 = scmp.eq.s32.totalorder %s16, 1
    %p34 = por %p32, %p33
    %p35 = scmp.ne.s32.totalorder %s24, %s25
    %p36 = scmp.eq.s32.totalorder %s16, 0
    %p37 = por %p35, %p36
    %p38 = scmp.ne.s32.totalorder %s24, %s25
    %p39 = scmp.eq.s32.totalorder %s17, 1
    %p40 = por %p38, %p39
    %p42 = scmp.ne.s32.totalorder %s25, %s41
    %p43 = scmp.eq.s32.totalorder %s17, 0
    %p44 = por %p42, %p43
    %s46 = sadd.s32 %s45, 1
    %p49 = scmp.eq.s32.totalorder %s11, 1
    %p50 = scmp.ne.s32.totalorder %s45, %s47
    %p51 = scmp.eq.s32.totalorder %s11, 0
    %p52 = por %p50, %p51
    %p53 = scmp.ne.s32.totalorder %s45, %s47
    %p54 = scmp.eq.s32.totalorder %s16, 1
    %p55 = por %p53, %p54
    %p56 = scmp.ne.s32.totalorder %s47, %s48
    %p57 = scmp.eq.s32.totalorder %s16, 0
    %p58 = por %p56, %p57
    %p59 = scmp.ne.s32.totalorder %s47, %s48
    %p60 = scmp.eq.s32.totalorder %s17, 1
    %p61 = por %p59, %p60
    %p63 = scmp.ne.s32.totalorder %s48, %s62
    %p64 = scmp.eq.s32.totalorder %s17, 0
    %p65 = por %p63, %p64
    %s67 = sadd.s32 %s66, 1
    %p70 = scmp.eq.s32.totalorder %s11, 1
    %p71 = scmp.ne.s32.totalorder %s66, %s68
    %p72 = scmp.eq.s32.totalorder %s11, 0
    %p73 = por %p71, %p72
    %p74 = scmp.ne.s32.totalorder %s66, %s68
    %p75 = scmp.eq.s32.totalorder %s16, 1
    %p76 = por %p74, %p75
    %p77 = scmp.ne.s32.totalorder %s68, %s69
    %p78 = scmp.eq.s32.totalorder %s16, 0
    %p79 = por %p77, %p78
    %p80 = scmp.ne.s32.totalorder %s68, %s69
    %p81 = scmp.eq.s32.totalorder %s17, 1
    %p82 = por %p80, %p81
    %p84 = scmp.ne.s32.totalorder %s69, %s83
    %p85 = scmp.eq.s32.totalorder %s17, 0
    %p86 = por %p84, %p85
    %s88 = sadd.s32 %s87, 1
    %p91 = scmp.eq.s32.totalorder %s11, 1
    %p92 = scmp.ne.s32.totalorder %s87, %s89
    %p93 = scmp.eq.s32.totalorder %s11, 0
    %p94 = por %p92, %p93
    %p95 = scmp.ne.s32.totalorder %s87, %s89
    %p96 = scmp.eq.s32.totalorder %s16, 1
    %p97 = por %p95, %p96
    %p98 = scmp.ne.s32.totalorder %s89, %s90
    %p99 = scmp.eq.s32.totalorder %s16, 0
    %p100 = por %p98, %p99
    %p101 = scmp.ne.s32.totalorder %s89, %s90
    %p102 = scmp.eq.s32.totalorder %s17, 1
    %p103 = por %p101, %p102
    %p105 = scmp.ne.s32.totalorder %s90, %s104
    %p106 = scmp.eq.s32.totalorder %s17, 0
    %p107 = por %p105, %p106
    %s109 = sadd.s32 %s108, 1
    %p112 = scmp.eq.s32.totalorder %s11, 1
    %p113 = scmp.ne.s32.totalorder %s108, %s110
    %p114 = scmp.eq.s32.totalorder %s11, 0
    %p115 = por %p113, %p114
    %p116 = scmp.ne.s32.totalorder %s108, %s110
    %p117 = scmp.eq.s32.totalorder %s16, 1
    %p118 = por %p116, %p117
    %p119 = scmp.ne.s32.totalorder %s110, %s111
    %p120 = scmp.eq.s32.totalorder %s16, 0
    %p121 = por %p119, %p120
    %p122 = scmp.ne.s32.totalorder %s110, %s111
    %p123 = scmp.eq.s32.totalorder %s17, 1
    %p124 = por %p122, %p123
    %p126 = scmp.ne.s32.totalorder %s111, %s125
    %p127 = scmp.eq.s32.totalorder %s17, 0
    %p128 = por %p126, %p127
    %s129 = ssub.s32 %s11, %s18
    %p130 = scmp.eq.s32.totalorder %s129, 0
    %s132 = sadd.s32 %s131, 1
    %s133 = scalar_select %p130, %s131, %s132
    %p136 = pneg %p130
    %p137 = scmp.eq.s32.totalorder %s11, 1
    %p138 = por %p136, %p137
    %p139 = scmp.ne.s32.totalorder %s131, %s134
    %p140 = scmp.eq.s32.totalorder %s11, 0
    %p141 = por %p139, %p140
    %p142 = scmp.ne.s32.totalorder %s131, %s134
    %p143 = scmp.eq.s32.totalorder %s16, 1
    %p144 = por %p142, %p143
    %p145 = scmp.ne.s32.totalorder %s134, %s135
    %p146 = scmp.eq.s32.totalorder %s16, 0
    %p147 = por %p145, %p146
    %p148 = scmp.ne.s32.totalorder %s134, %s135
    %p149 = scmp.eq.s32.totalorder %s17, 1
    %p150 = por %p148, %p149
    %p152 = scmp.ne.s32.totalorder %s135, %s151
    %p153 = scmp.eq.s32.totalorder %s17, 0
    %p154 = por %p152, %p153
    %p155 = scmp.le.s32.totalorder 1, %s11
    %p156 = scmp.lt.s32.totalorder %s11, 3
    %p157 = pnand %p155, %p156
    %p158 = pneg %p157
    // Predicated region
    $region9: #{cae_forward_pallas.1} parent=5 // pred_check
      _
    $region10: #{cae_forward_pallas.1} parent=5 // pred_check_branch
      %160 = sbr.rel (%p157) target = $region12
    $region11: #{cae_forward_pallas.1} parent=5 // pred_region
      %s161 = ssub.s32 %s11, 1
      // Predicated region
      $region13: #{cae_forward_pallas.1} parent=11 // pred_check
        %p162 = pneg %p58
      $region14: #{cae_forward_pallas.1} parent=11 // pred_check_branch
        %164 = sbr.rel (%p162) target = $region16
      $region15: #{cae_forward_pallas.1} parent=11 // pred_region
        _
      $region16: #{cae_forward_pallas.1} parent=11 // pred_fallthru
        _
      // Predicated region
      $region17: #{cae_forward_pallas.1} parent=11 // pred_check
        %p165 = pneg %p79
      $region18: #{cae_forward_pallas.1} parent=11 // pred_check_branch
        %167 = sbr.rel (%p165) target = $region20
      $region19: #{cae_forward_pallas.1} parent=11 // pred_region
        _
      $region20: #{cae_forward_pallas.1} parent=11 // pred_fallthru
        _
      // Predicated region
      $region21: #{cae_forward_pallas.1} parent=11 // pred_check
        %p168 = pneg %p100
      $region22: #{cae_forward_pallas.1} parent=11 // pred_check_branch
        %170 = sbr.rel (%p168) target = $region24
      $region23: #{cae_forward_pallas.1} parent=11 // pred_region
        _
      $region24: #{cae_forward_pallas.1} parent=11 // pred_fallthru
        _
      // Predicated region
      $region25: #{cae_forward_pallas.1} parent=11 // pred_check
        %p171 = pneg %p121
      $region26: #{cae_forward_pallas.1} parent=11 // pred_check_branch
        %173 = sbr.rel (%p171) target = $region28
      $region27: #{cae_forward_pallas.1} parent=11 // pred_region
        _
      $region28: #{cae_forward_pallas.1} parent=11 // pred_fallthru
        _
    $region12: #{cae_forward_pallas.1} parent=5 // pred_fallthru
      _
    %p174 = scmp.lt.s32.totalorder %s11, 2
    // Predicated region
    $region29: #{cae_forward_pallas.1} parent=5 // pred_check
      %p175 = pneg %p174
    $region30: #{cae_forward_pallas.1} parent=5 // pred_check_branch
      %177 = sbr.rel (%p175) target = $region32
    $region31: #{cae_forward_pallas.1} parent=5 // pred_region
      // Predicated region
      $region33: #{cae_forward_pallas.1} parent=31 // pred_check
        %p178 = pneg %p31
      $region34: #{cae_forward_pallas.1} parent=31 // pred_check_branch
        %180 = sbr.rel (%p178) target = $region36
      $region35: #{cae_forward_pallas.1} parent=31 // pred_region
        %p181 = scmp.lt.s32.totalorder %s11, 1
        %s182 = scalar_select %p181, %s11, 1
        %s183 = smul.addr %s182, 8
        %s184 = smul.addr %s183, 4
        %s185 = scalar_lea.vmem %s0, %s184
      $region36: #{cae_forward_pallas.1} parent=31 // pred_fallthru
        _
    $region32: #{cae_forward_pallas.1} parent=5 // pred_fallthru
      _
    %p186 = scmp.le.s32.totalorder 1, %s11
    %p187 = scmp.lt.s32.totalorder %s11, 3
    %p188 = pnand %p186, %p187
    %p189 = pneg %p188
    // Predicated region
    $region37: #{cae_forward_pallas.1} parent=5 // pred_check
      _
    $region38: #{cae_forward_pallas.1} parent=5 // pred_check_branch
      %191 = sbr.rel (%p188) target = $region40
    $region39: #{cae_forward_pallas.1} parent=5 // pred_region
      %s192 = ssub.s32 %s11, 1
      %p193 = scmp.lt.s32.totalorder %s16, 1
      %s194 = scalar_select %p193, %s16, 1
      %s195 = smul.addr %s194, 8
      %s196 = smul.addr %s195, 4
      %s197 = scalar_lea.vmem %s0, %s196
      %p198 = pneg %p37
      %p199 = pneg %p34
      %p200 = pneg %p58
      %p201 = pneg %p55
      %p202 = pneg %p79
      %p203 = pneg %p76
      %p204 = pneg %p100
      %p205 = pneg %p97
      %p206 = pneg %p121
      %p207 = pneg %p118
      %p208 = pneg %p147
      %p209 = pneg %p144
      %p210 = scmp.lt.s32.totalorder %s16, 1
      %s211 = scalar_select %p210, %s16, 1
      %s212 = smul.addr %s211, 2
      %s213 = smul.addr %s212, 4
      %s214 = scalar_lea.vmem %s5, %s213
      %p215 = scmp.lt.s32.totalorder %s16, 1
      %s216 = scalar_select %p215, %s16, 1
      %s217 = smul.addr %s216, 8
      %s218 = smul.addr %s217, 4
      %s219 = scalar_lea.vmem %s0, %s218
      %p220 = scmp.lt.s32.totalorder %s16, 1
      %s221 = scalar_select %p220, %s16, 1
      %s222 = smul.addr %s221, 2
      %s223 = smul.addr %s222, 4
      %s224 = scalar_lea.vmem %s5, %s223
      %v226 = vld [vmem:[%s1] sm:$0xf]
      %v227 = vld [vmem:[%s2] sm:$0xff]
      %v228 = vld [vmem:[%s3] sm:$0xff]
      %v229 = vld [vmem:[%s3 + $0x8] sm:$0xff]
      %v230 = vld [vmem:[%s4] sm:$0xff]
      %v231 = vld [vmem:[%s4 + $0x8] sm:$0xff]
      %v232 = vld [vmem:[%s219] sm:$0xf]
      %v233 = vld [vmem:[%s219] sm:$0xff]
      %s234 = scalar_lea.vmem %s219, 8
      %v235 = vld [vmem:[%s234] sm:$0xf]
      %v236 = vld [vmem:[%s234] sm:$0xff]
      %s237 = scalar_lea.vmem %s219, 16
      %v238 = vld [vmem:[%s237] sm:$0xf]
      %v239 = vld [vmem:[%s237] sm:$0xff]
      %s240 = scalar_lea.vmem %s219, 24
      %v241 = vld [vmem:[%s240] sm:$0xf]
      %v242 = vld [vmem:[%s240] sm:$0xff]
      %v244 = vunpack.c.l.b16 %v233
      %v245 = vunpack.c.h.b16 %v233
      %v246 = vpack.c.b16 %v244, %v244
      %v247 = vpack.c.b16 %v245, %v245
      %248 = vrot.lane.b32.xlu0 %v246, 127
      %v249 = vpop.permute.xlu0 %248
      %250 = vrot.lane.b32.xlu0 %v247, 127
      %v251 = vpop.permute.xlu0 %250
      %vm252 = vcmask 1039360
      %v253 = vsel %vm252, %v249, %v251
      %v255 = vunpack.c.l.b16 %v239
      %v256 = vunpack.c.h.b16 %v239
      %v257 = vpack.c.b16 %v255, %v255
      %v258 = vpack.c.b16 %v256, %v256
      %259 = vrot.lane.b32.xlu0 %v257, 127
      %v260 = vpop.permute.xlu0 %259
      %261 = vrot.lane.b32.xlu0 %v258, 127
      %v262 = vpop.permute.xlu0 %261
      %v263 = vsel %vm252, %v260, %v262
      %v265 = vunpack.c.l.b16 %v236
      %v266 = vunpack.c.h.b16 %v236
      %v267 = vpack.c.b16 %v265, %v265
      %v268 = vpack.c.b16 %v266, %v266
      %269 = vrot.lane.b32.xlu0 %v267, 127
      %v270 = vpop.permute.xlu0 %269
      %271 = vrot.lane.b32.xlu0 %v268, 127
      %v272 = vpop.permute.xlu0 %271
      %v273 = vsel %vm252, %v270, %v272
      %v275 = vunpack.c.l.b16 %v242
      %v276 = vunpack.c.h.b16 %v242
      %v277 = vpack.c.b16 %v275, %v275
      %v278 = vpack.c.b16 %v276, %v276
      %279 = vrot.lane.b32.xlu0 %v277, 127
      %v280 = vpop.permute.xlu0 %279
      %281 = vrot.lane.b32.xlu0 %v278, 127
      %v282 = vpop.permute.xlu0 %281
      %v283 = vsel %vm252, %v280, %v282
      %284 = vrot.lane.b32.xlu0 %v246, 119
      %v285 = vpop.permute.xlu0 %284
      %286 = vrot.lane.b32.xlu0 %v247, 119
      %v287 = vpop.permute.xlu0 %286
      %vm288 = vcmask 973824
      %v289 = vsel %vm288, %v285, %v287
      %290 = vrot.lane.b32.xlu0 %v267, 119
      %v291 = vpop.permute.xlu0 %290
      %292 = vrot.lane.b32.xlu0 %v268, 119
      %v293 = vpop.permute.xlu0 %292
      %v294 = vsel %vm288, %v291, %v293
      %295 = vrot.lane.b32.xlu0 %v246, 118
      %v296 = vpop.permute.xlu0 %295
      %297 = vrot.lane.b32.xlu0 %v247, 118
      %v298 = vpop.permute.xlu0 %297
      %vm299 = vcmask 965632
      %v300 = vsel %vm299, %v296, %v298
      %301 = vrot.lane.b32.xlu0 %v267, 118
      %v302 = vpop.permute.xlu0 %301
      %303 = vrot.lane.b32.xlu0 %v268, 118
      %v304 = vpop.permute.xlu0 %303
      %v305 = vsel %vm299, %v302, %v304
      %306 = vrot.lane.b32.xlu0 %v257, 119
      %v307 = vpop.permute.xlu0 %306
      %308 = vrot.lane.b32.xlu0 %v258, 119
      %v309 = vpop.permute.xlu0 %308
      %v310 = vsel %vm288, %v307, %v309
      %311 = vrot.lane.b32.xlu0 %v277, 119
      %v312 = vpop.permute.xlu0 %311
      %313 = vrot.lane.b32.xlu0 %v278, 119
      %v314 = vpop.permute.xlu0 %313
      %v315 = vsel %vm288, %v312, %v314
      %316 = vrot.lane.b32.xlu0 %v257, 118
      %v317 = vpop.permute.xlu0 %316
      %318 = vrot.lane.b32.xlu0 %v258, 118
      %v319 = vpop.permute.xlu0 %318
      %v320 = vsel %vm299, %v317, %v319
      %321 = vrot.lane.b32.xlu0 %v277, 118
      %v322 = vpop.permute.xlu0 %321
      %323 = vrot.lane.b32.xlu0 %v278, 118
      %v324 = vpop.permute.xlu0 %323
      %v325 = vsel %vm299, %v322, %v324
      %v328 = vrot.slane %v235, 4
      %v329 = vrot.slane %v253, 4
      %v330 = vrot.slane %v241, 4
      %v331 = vrot.slane %v263, 4
      %v333 = vrot.slane %v238, 4
      %v334 = vrot.slane %v289, 4
      %v335 = vrot.slane %v294, 4
      %v336 = vrot.slane %v283, 4
      %v337 = vrot.slane %v300, 4
      %v338 = vrot.slane %v305, 4
      %v339 = vrot.slane %v315, 4
      %v340 = vrot.slane %v320, 4
      %vm341 = vcmask 1043456
      %v344 = vsel %vm341, %v232, %v328
      %v348 = vsel %vm341, %v235, %v329
      %v352 = vsel %vm341, %v238, %v330
      %v356 = vsel %vm341, %v241, %v331
      %v360 = vsel %vm341, %v253, %v333
      %v363 = vsel %vm341, %v273, %v330
      %v367 = vsel %vm341, %v263, %v334
      %v371 = vsel %vm341, %v283, %v335
      %v374 = vsel %vm341, %v263, %v336
      %v378 = vsel %vm341, %v294, %v337
      %v382 = vsel %vm341, %v300, %v338
      %v385 = vsel %vm341, %v289, %v335
      %v389 = vsel %vm341, %v310, %v339
      %v393 = vsel %vm341, %v315, %v340
      %vm395 = vcmask 588800
      %v397 = vsel %vm395, %v226, 0
      %v399 = vsel %vm341, %v300, 0
      %v402 = vsel %vm341, %v305, 0
      %v405 = vsel %vm341, %v320, 0
      %v408 = vsel %vm341, %v325, 0
      %410 = vmatprep.subr.bf16.mxu0 %v348
      %411 = vmatpush1.bf16.msra.mxu0 %v344
      %412 = vmatprep.subr.bf16.mxu0 %v363
      %413 = vmatpush1.bf16.msra.mxu0 %v360
      %414 = vmatprep.subr.bf16.mxu0 %v374
      %415 = vmatpush1.bf16.msra.mxu0 %v356
      %416 = vmatprep.subr.bf16.mxu0 %v378
      %417 = vmatpush1.bf16.msra.mxu0 %v385
      %418 = vmatprep.subr.bf16.mxu0 %v402
      %419 = vmatpush1.bf16.msra.mxu0 %v399
      %420 = vmatprep.subr.bf16.mxu0 0
      %421 = vmatpush1.bf16.msra.mxu0 0
      %422 = vmatprep.subr.bf16.mxu0 0
      %423 = vmatpush1.bf16.msra.mxu0 0
      %424 = vmatprep.subr.bf16.mxu0 0
      %425 = vmatpush1.bf16.msra.mxu0 0
      %426 = vmatprep.subr.bf16.mxu0 0
      %427 = vmatpush1.bf16.msra.mxu0 0
      %428 = vmatprep.subr.bf16.mxu0 0
      %429 = vmatpush1.bf16.msra.mxu0 0
      %430 = vmatprep.subr.bf16.mxu0 0
      %431 = vmatpush1.bf16.msra.mxu0 0
      %432 = vmatprep.subr.bf16.mxu0 0
      %433 = vmatpush1.bf16.msra.mxu0 0
      %434 = vmatprep.subr.bf16.mxu0 0
      %435 = vmatpush1.bf16.msra.mxu0 0
      %436 = vmatprep.subr.bf16.mxu0 0
      %437 = vmatpush1.bf16.msra.mxu0 0
      %438 = vmatprep.subr.bf16.mxu0 0
      %439 = vmatpush1.bf16.msra.mxu0 0
      %440 = vmatprep.subr.bf16.mxu0 0
      %441 = vmatpush1.bf16.msra.mxu0 0
      %442 = vmatprep.mubr.bf16.mxu0 0
      %443 = vmatmul.mubr.bf16.gmra.mrb[0].mxu0 %v397
      %v444 = vpop.f32.mrb[0].mxu0
      %v445 = vadd.f32 0.0, %v444
      %v446 = vpop.f32.mrb[0].mxu0
      %v447 = vadd.f32 0.0, %v446
      %v448 = vpop.f32.mrb[0].mxu0
      %v449 = vpop.f32.mrb[0].mxu0
      %450 = vdwg.mxu0
      %451 = vmatprep.subr.bf16.mxu0 %v356
      %452 = vmatpush1.bf16.msra.mxu0 %v352
      %453 = vmatprep.subr.bf16.mxu0 %v371
      %454 = vmatpush1.bf16.msra.mxu0 %v367
      %455 = vmatprep.subr.bf16.mxu0 %v382
      %456 = vmatpush1.bf16.msra.mxu0 %v378
      %457 = vmatprep.subr.bf16.mxu0 %v393
      %458 = vmatpush1.bf16.msra.mxu0 %v389
      %459 = vmatprep.subr.bf16.mxu0 %v408
      %460 = vmatpush1.bf16.msra.mxu0 %v405
      %461 = vmatprep.subr.bf16.mxu0 0
      %462 = vmatpush1.bf16.msra.mxu0 0
      %463 = vmatprep.subr.bf16.mxu0 0
      %464 = vmatpush1.bf16.msra.mxu0 0
      %465 = vmatprep.subr.bf16.mxu0 0
      %466 = vmatpush1.bf16.msra.mxu0 0
      %467 = vmatprep.subr.bf16.mxu0 0
      %468 = vmatpush1.bf16.msra.mxu0 0
      %469 = vmatprep.subr.bf16.mxu0 0
      %470 = vmatpush1.bf16.msra.mxu0 0
      %471 = vmatprep.subr.bf16.mxu0 0
      %472 = vmatpush1.bf16.msra.mxu0 0
      %473 = vmatprep.subr.bf16.mxu0 0
      %474 = vmatpush1.bf16.msra.mxu0 0
      %475 = vmatprep.subr.bf16.mxu0 0
      %476 = vmatpush1.bf16.msra.mxu0 0
      %477 = vmatprep.subr.bf16.mxu0 0
      %478 = vmatpush1.bf16.msra.mxu0 0
      %479 = vmatprep.subr.bf16.mxu0 0
      %480 = vmatpush1.bf16.msra.mxu0 0
      %481 = vmatprep.subr.bf16.mxu0 0
      %482 = vmatpush1.bf16.msra.mxu0 0
      %483 = vmatprep.mubr.bf16.mxu0 0
      %484 = vmatmul.mubr.bf16.gmra.mrb[0].mxu0 %v397
      %v485 = vpop.f32.mrb[0].mxu0
      %v486 = vadd.f32 0.0, %v485
      %v487 = vpop.f32.mrb[0].mxu0
      %v488 = vadd.f32 0.0, %v487
      %v489 = vpop.f32.mrb[0].mxu0
      %v490 = vpop.f32.mrb[0].mxu0
      %491 = vdwg.mxu0
      %v492 = vmax.f32 %v445, %v447
      %v493 = vmax.f32 %v486, %v488
      %v494 = vmax.f32 %v492, %v493
      %496 = vset.pattern.permute.xlu0 0
      %497 = vperm.xlu0 %496, %v227
      %v498 = vpop.permute.xlu0 %497
      %v500 = vadd.f32 %v494, %v498
      %vm501 = vcmp.gt.f32.partialorder %v500, 0.0
      %v502 = vmul.f32 %v500, 0.01
      %v503 = vsel %vm501, %v500, %v502
      %505 = vset.pattern.permute.xlu0 0
      %506 = vperm.xlu0 %505, %v230
      %v507 = vpop.permute.xlu0 %506
      %510 = vset.pattern.permute.xlu0 0
      %511 = vperm.xlu0 %510, %v231
      %v512 = vpop.permute.xlu0 %511
      %vm514 = vcmask 64512
      %v516 = vsel %vm514, %v228, 0
      %v519 = vsel %vm514, %v229, 0
      %521 = vmatprep.subr.mxu0 0.0
      %522 = vmatpush1.msra.mxu0 %v503
      %523 = vmatprep.subr.mxu0 0.0
      %524 = vmatpush1.msra.mxu0 0.0
      %525 = vmatprep.subr.mxu0 0.0
      %526 = vmatpush1.msra.mxu0 0.0
      %527 = vmatprep.subr.mxu0 0.0
      %528 = vmatpush1.msra.mxu0 0.0
      %529 = vmatprep.subr.mxu0 0.0
      %530 = vmatpush1.msra.mxu0 0.0
      %531 = vmatprep.subr.mxu0 0.0
      %532 = vmatpush1.msra.mxu0 0.0
      %533 = vmatprep.subr.mxu0 0.0
      %534 = vmatpush1.msra.mxu0 0.0
      %535 = vmatprep.subr.mxu0 0.0
      %536 = vmatpush1.msra.mxu0 0.0
      %537 = vmatprep.subr.mxu0 0.0
      %538 = vmatpush1.msra.mxu0 0.0
      %539 = vmatprep.subr.mxu0 0.0
      %540 = vmatpush1.msra.mxu0 0.0
      %541 = vmatprep.subr.mxu0 0.0
      %542 = vmatpush1.msra.mxu0 0.0
      %543 = vmatprep.subr.mxu0 0.0
      %544 = vmatpush1.msra.mxu0 0.0
      %545 = vmatprep.subr.mxu0 0.0
      %546 = vmatpush1.msra.mxu0 0.0
      %547 = vmatprep.subr.mxu0 0.0
      %548 = vmatpush1.msra.mxu0 0.0
      %549 = vmatprep.subr.mxu0 0.0
      %550 = vmatpush1.msra.mxu0 0.0
      %551 = vmatprep.subr.mxu0 0.0
      %552 = vmatpush1.msra.mxu0 0.0
      %553 = vmatprep.subr.mxu0 0.0
      %554 = vmatpush1.msra.mxu0 0.0
      %555 = vmatprep.subr.mxu0 0.0
      %556 = vmatpush1.msra.mxu0 0.0
      %557 = vmatprep.subr.mxu0 0.0
      %558 = vmatpush1.msra.mxu0 0.0
      %559 = vmatprep.subr.mxu0 0.0
      %560 = vmatpush1.msra.mxu0 0.0
      %561 = vmatprep.subr.mxu0 0.0
      %562 = vmatpush1.msra.mxu0 0.0
      %563 = vmatprep.subr.mxu0 0.0
      %564 = vmatpush1.msra.mxu0 0.0
      %565 = vmatprep.subr.mxu0 0.0
      %566 = vmatpush1.msra.mxu0 0.0
      %567 = vmatprep.subr.mxu0 0.0
      %568 = vmatpush1.msra.mxu0 0.0
      %569 = vmatprep.subr.mxu0 0.0
      %570 = vmatpush1.msra.mxu0 0.0
      %571 = vmatprep.subr.mxu0 0.0
      %572 = vmatpush1.msra.mxu0 0.0
      %573 = vmatprep.subr.mxu0 0.0
      %574 = vmatpush1.msra.mxu0 0.0
      %575 = vmatprep.subr.mxu0 0.0
      %576 = vmatpush1.msra.mxu0 0.0
      %577 = vmatprep.subr.mxu0 0.0
      %578 = vmatpush1.msra.mxu0 0.0
      %579 = vmatprep.subr.mxu0 0.0
      %580 = vmatpush1.msra.mxu0 0.0
      %581 = vmatprep.subr.mxu0 0.0
      %582 = vmatpush1.msra.mxu0 0.0
      %583 = vmatprep.subr.mxu0 0.0
      %584 = vmatpush1.msra.mxu0 0.0
      %585 = vmatprep.mubr.f32.mxu0 0.0
      %586 = vmatmul.mubr.f32.gmra.mrb[0].mxu0 %v516
      %v587 = vpop.f32.mrb[0].mxu0
      %v588 = vadd.f32 %v507, %v587
      %v589 = vpop.f32.mrb[0].mxu0
      %590 = vmatprep.mubr.f32.mxu0 0.0
      %591 = vmatmul.mubr.f32.gmra.mrb[0].mxu0 %v519
      %v592 = vpop.f32.mrb[0].mxu0
      %v593 = vadd.f32 %v512, %v592
      %v594 = vpop.f32.mrb[0].mxu0
      %595 = vdwg.mxu0
      %v596 = vxor.u32 %v588, 2147483648
      %v597 = vxor.u32 %v593, 2147483648
      %v598 = vmul.f32 %v596, 1.442695
      %v599 = vpow.pop %v598
      %v600 = vmul.f32 %v597, 1.442695
      %v601 = vpow.pop %v600
      %v602 = vadd.f32 %v599, 1.0
      %v603 = vadd.f32 %v601, 1.0
      %v604 = vrcp.pop %v602
      %v605 = vmul.f32 1.0, %v604
      %v606 = vrcp.pop %v603
      %v607 = vmul.f32 1.0, %v606
      %v608 = vpack.c.bf16 %v607, %v605
      %v610 = vunpack.c.l.b16 %v608
      %v611 = vunpack.c.h.b16 %v608
      %v612 = vpack.c.b16 %v610, %v610
      %v613 = vpack.c.b16 %v611, %v611
      %616 = vst [vmem:[%s224] sm:$0xf] %v612
      %617 = vst [vmem:[%s224 + $0x4] sm:$0xf] %v613
      %p618 = scmp.lt.s32.totalorder %s16, 1
      %s619 = scalar_select %p618, %s16, 1
      %s620 = smul.addr %s619, 2
      %s621 = smul.addr %s620, 4
      %s622 = scalar_lea.vmem %s5, %s621
      // Predicated region
      $region41: #{cae_forward_pallas.1} parent=39 // pred_check
        %p623 = pneg %p144
      $region42: #{cae_forward_pallas.1} parent=39 // pred_check_branch
        %625 = sbr.rel (%p623) target = $region44
      $region43: #{cae_forward_pallas.1} parent=39 // pred_region
        _
      $region44: #{cae_forward_pallas.1} parent=39 // pred_fallthru
        _
    $region40: #{cae_forward_pallas.1} parent=5 // pred_fallthru
      _
    %p626 = scmp.le.s32.totalorder 2, %s11
    // Predicated region
    $region45: #{cae_forward_pallas.1} parent=5 // pred_check
      %p627 = pneg %p626
    $region46: #{cae_forward_pallas.1} parent=5 // pred_check_branch
      %629 = sbr.rel (%p627) target = $region48
    $region47: #{cae_forward_pallas.1} parent=5 // pred_region
      %s630 = ssub.s32 %s11, 2
      // Predicated region
      $region49: #{cae_forward_pallas.1} parent=47 // pred_check
        %p631 = pneg %p150
      $region50: #{cae_forward_pallas.1} parent=47 // pred_check_branch
        %633 = sbr.rel (%p631) target = $region52
      $region51: #{cae_forward_pallas.1} parent=47 // pred_region
        %p634 = scmp.lt.s32.totalorder %s17, 1
        %s635 = scalar_select %p634, %s17, 1
        %s636 = smul.addr %s635, 2
        %s637 = smul.addr %s636, 4
        %s638 = scalar_lea.vmem %s5, %s637
      $region52: #{cae_forward_pallas.1} parent=47 // pred_fallthru
        _
    $region48: #{cae_forward_pallas.1} parent=5 // pred_fallthru
      _
  $region6: #{cae_forward_pallas.1} parent=0 // loop_footer
    %s15 = sadd.s32 1, %s11
  $region7: #{cae_forward_pallas.1} parent=0 // loop_footer_branch
    %10 = sbr.rel target = $region3
  $region8: #{cae_forward_pallas.1} parent=0 // loop_exit
    _

</llo_original>
